<compile_context>
chip_gen: v6e
topology: v6e:2x2x1
jax: 0.10.0
libtpu: 0.0.40
codegen_flags: <defaults>
</compile_context>

<pallas_src>
import functools
import math

import jax
import jax.numpy as jnp
from jax.experimental import pallas as pl
from jax.experimental.pallas import tpu as pltpu

EPS_LN = 1e-5  # nn.LayerNorm default


def _layernorm(x, g, b):
    mu = jnp.mean(x, axis=-1, keepdims=True)
    var = jnp.mean(jnp.square(x - mu), axis=-1, keepdims=True)
    return (x - mu) * jax.lax.rsqrt(var + EPS_LN) * g + b


# --------------------- patch embedding (conv as tiled matmul) -----------------

def _patch_embed_kernel(x_ref, w_ref, o_ref):
    o_ref[...] = jnp.dot(x_ref[...], w_ref[...],
                         preferred_element_type=jnp.float32).astype(o_ref.dtype)


def pallas_patch_embed(patches, w):
    """patches: (M, C*p*p) bf16, w: (C*p*p, width) bf16 -> (M, width) bf16."""
    M, K = patches.shape
    N = w.shape[1]
    tm = M
    for cand in (512, 256, 128):
        if M % cand == 0:
            tm = cand
            break
    return pl.pallas_call(
        _patch_embed_kernel,
        out_shape=jax.ShapeDtypeStruct((M, N), jnp.bfloat16),
        grid=(M // tm,),
        in_specs=[pl.BlockSpec((tm, K), lambda i: (i, 0)),
                  pl.BlockSpec((K, N), lambda i: (0, 0))],
        out_specs=pl.BlockSpec((tm, N), lambda i: (i, 0)),
        compiler_params=pltpu.CompilerParams(dimension_semantics=("parallel",)),
    )(patches, w)


# --------------------------- fused ViT transformer ----------------------------

def _vit_kernel(x_ref, pos_ref, lnpre_g_ref, lnpre_b_ref, small_ref,
                wqkv_ref, wo_ref, wfc_ref, wpr_ref,
                lnpost_g_ref, lnpost_b_ref, proj_ref,
                o_ref, res_ref, *, heads, batch_tile, seq_len, seq_pad):
    layer = pl.program_id(1)
    n_layers = pl.num_programs(1)

    Bt, Sp = batch_tile, seq_pad
    W = res_ref.shape[1]
    dh = W // heads
    E = proj_ref.shape[1]
    scale = 1.0 / math.sqrt(dh)

    # Fused "pre": +positional embedding, ln_pre (once per image-tile, step 0).
    @pl.when(layer == 0)
    def _():
        xin = x_ref[...].astype(jnp.float32) + pos_ref[...]
        res_ref[...] = _layernorm(xin, lnpre_g_ref[...], lnpre_b_ref[...])

    x = res_ref[...]                                   # (Bt*Sp, W) f32 residual

    # One packed (1, 13W) block carries every small per-layer parameter.
    vec = small_ref[0]                                 # (1, 13W) f32
    ln1_g, ln1_b = vec[:, 0 * W:1 * W], vec[:, 1 * W:2 * W]
    ln2_g, ln2_b = vec[:, 2 * W:3 * W], vec[:, 3 * W:4 * W]
    bo, bpr = vec[:, 4 * W:5 * W], vec[:, 5 * W:6 * W]
    bqkv = vec[:, 6 * W:9 * W]
    bfc = vec[:, 9 * W:13 * W]

    # --- multi-head self-attention (pre-LN); QKV/out-proj matmuls fold Bt*Sp --
    h = _layernorm(x, ln1_g, ln1_b).astype(jnp.bfloat16)
    qkv = jnp.dot(h, wqkv_ref[0], preferred_element_type=jnp.float32) + bqkv

    key_idx = jax.lax.broadcasted_iota(jnp.int32, (1, Sp), 1)
    kmask = jnp.where(key_idx < seq_len, 0.0, -1e30).astype(jnp.float32)

    ctx_rows = []
    for i in range(Bt):                                # Bt is static & small
        r0 = i * Sp                                    # sublane-aligned (Sp%8==0)
        qkv_i = qkv[r0:r0 + Sp, :]
        q_i = jnp.transpose(qkv_i[:, 0 * W:1 * W].reshape(Sp, heads, dh),
                            (1, 0, 2)).astype(jnp.bfloat16)
        k_i = jnp.transpose(qkv_i[:, 1 * W:2 * W].reshape(Sp, heads, dh),
                            (1, 0, 2)).astype(jnp.bfloat16)
        v_i = jnp.transpose(qkv_i[:, 2 * W:3 * W].reshape(Sp, heads, dh),
                            (1, 0, 2)).astype(jnp.bfloat16)
        s = jnp.einsum('hqd,hkd->hqk', q_i, k_i,
                       preferred_element_type=jnp.float32) * scale + kmask
        s = s - jnp.max(s, axis=-1, keepdims=True)
        p = jnp.exp(s)
        # TODO(synk): use approx=False if bit-level softmax parity is required.
        p = p * pl.reciprocal(jnp.sum(p, axis=-1, keepdims=True), approx=True)
        ctx = jnp.einsum('hqk,hkd->hqd', p.astype(jnp.bfloat16), v_i,
                         preferred_element_type=jnp.float32)     # (H, Sp, dh)
        ctx_rows.append(jnp.transpose(ctx, (1, 0, 2)).reshape(Sp, W))
    attn = jnp.concatenate(ctx_rows, axis=0).astype(jnp.bfloat16)   # (Bt*Sp, W)
    attn = jnp.dot(attn, wo_ref[0], preferred_element_type=jnp.float32) + bo
    x = x + attn

    # --- MLP with QuickGELU (force_quick_gelu=True), elementwise kept in f32 --
    h2 = _layernorm(x, ln2_g, ln2_b).astype(jnp.bfloat16)
    m = jnp.dot(h2, wfc_ref[0], preferred_element_type=jnp.float32) + bfc
    m = m * jax.nn.sigmoid(1.702 * m)                               # QuickGELU
    m = jnp.dot(m.astype(jnp.bfloat16), wpr_ref[0],
                preferred_element_type=jnp.float32) + bpr
    x = x + m
    res_ref[...] = x

    # Fused head: CLS pool, ln_post, projection, L2-normalize (last layer step).
    @pl.when(layer == n_layers - 1)
    def _():
        cls = jnp.concatenate([x[i * Sp:i * Sp + 1, :] for i in range(Bt)],
                              axis=0)                               # (Bt, W)
        pooled = _layernorm(cls, lnpost_g_ref[...], lnpost_b_ref[...])
        f = jnp.dot(pooled.astype(jnp.bfloat16), proj_ref[...],
                    preferred_element_type=jnp.float32)             # (Bt, E)
        inv = jax.lax.rsqrt(jnp.maximum(jnp.sum(f * f, axis=-1, keepdims=True),
                                        1e-24))
        o_ref[...] = (f * inv).reshape(Bt, 1, E)


def _pick_batch_tile(B):
    for bt in (4, 3, 2):
        if B % bt == 0:
            return bt
    return 1


def pallas_transformer(xseq, params, batch_tile=None):
    """xseq: (B, S, W) bf16 tokens (CLS prepended). Returns (B, E) f32 features."""
    B, S, W = xseq.shape
    L = params['wqkv'].shape[0]
    E = params['proj'].shape[1]
    H4 = params['wfc'].shape[2]
    heads = params['heads']

    Bt = batch_tile if batch_tile is not None else _pick_batch_tile(B)
    assert B % Bt == 0

    # Pad sequence to a sublane multiple so per-image row slices are tile
    # aligned; padded keys are masked out of attention inside the kernel.
    Sp = ((S + 7) // 8) * 8
    if Sp != S:
        xseq = jnp.pad(xseq, ((0, 0), (0, Sp - S), (0, 0)))
    x_flat = xseq.reshape(B * Sp, W)                     # (B*Sp, W) bf16

    pos = params['pos_emb']
    if Sp != S:
        pos = jnp.pad(pos, ((0, Sp - S), (0, 0)))
    pos_tiled = jnp.tile(pos, (Bt, 1))                   # (Bt*Sp, W) f32

    Mt = Bt * Sp
    xmap = lambda g, l: (g, 0)
    const2 = lambda g, l: (0, 0)
    lyr3 = lambda g, l: (l, 0, 0)

    in_specs = [
        pl.BlockSpec((Mt, W), xmap),            # tokens (bf16), Bt images/step
        pl.BlockSpec((Mt, W), const2),          # pos_emb tiled over Bt
        pl.BlockSpec((1, W), const2),           # ln_pre gamma
        pl.BlockSpec((1, W), const2),           # ln_pre beta
        pl.BlockSpec((1, 1, 13 * W), lyr3),     # packed per-layer small params
        pl.BlockSpec((1, W, 3 * W), lyr3),      # qkv weight (bf16)
        pl.BlockSpec((1, W, W), lyr3),          # out-proj weight (bf16)
        pl.BlockSpec((1, W, H4), lyr3),         # c_fc weight (bf16)
        pl.BlockSpec((1, H4, W), lyr3),         # c_proj weight (bf16)
        pl.BlockSpec((1, W), const2),           # ln_post gamma
        pl.BlockSpec((1, W), const2),           # ln_post beta
        pl.BlockSpec((W, E), const2),           # image projection (bf16)
    ]

    out = pl.pallas_call(
        functools.partial(_vit_kernel, heads=heads, batch_tile=Bt,
                          seq_len=S, seq_pad=Sp),
        out_shape=jax.ShapeDtypeStruct((B, 1, E), jnp.float32),
        grid=(B // Bt, L),
        in_specs=in_specs,
        out_specs=pl.BlockSpec((Bt, 1, E), lambda g, l: (g, 0, 0)),
        scratch_shapes=[pltpu.VMEM((Mt, W), jnp.float32)],   # residual stream
        compiler_params=pltpu.CompilerParams(
            dimension_semantics=("parallel", "arbitrary"),
            # 48 MiB fits v7x's 64 MiB physical VMEM; raise toward ~96-112 MiB
            # on v5e/v6e when benchmarking real ViT-L/14 shapes.
            vmem_limit_bytes=48 * 1024 * 1024),
    )(x_flat, pos_tiled, params['ln_pre_g'], params['ln_pre_b'],
      params['small_packed'], params['wqkv'], params['wo'], params['wfc'],
      params['wpr'], params['ln_post_g'], params['ln_post_b'], params['proj'])
    return out[:, 0, :]


# --------------------------- parameters & forward -----------------------------

def init_params(key, *, channels, image_size, patch_size, width, heads, layers,
                embed_dim):
    assert width % heads == 0
    n_patches = (image_size // patch_size) ** 2
    seq = n_patches + 1
    mlp = 4 * width
    keys = iter(jax.random.split(key, 16))

    def nrm(shape, scale=0.02):
        return scale * jax.random.normal(next(keys), shape, dtype=jnp.float32)

    conv_w = nrm((width, channels, patch_size, patch_size))

    # per-layer small tensors, packed into one lane-aligned block per layer.
    ln1_g = jnp.ones((layers, 1, width), jnp.float32)
    ln1_b = jnp.zeros((layers, 1, width), jnp.float32)
    ln2_g = jnp.ones((layers, 1, width), jnp.float32)
    ln2_b = jnp.zeros((layers, 1, width), jnp.float32)
    bqkv = nrm((layers, 1, 3 * width))
    bo = nrm((layers, 1, width))
    bfc = nrm((layers, 1, mlp))
    bpr = nrm((layers, 1, width))
    small_packed = jnp.concatenate(
        [ln1_g, ln1_b, ln2_g, ln2_b, bo, bpr, bqkv, bfc], axis=-1)  # (L,1,13W)

    params = {
        'patch_size': patch_size,
        'heads': heads,
        # Conv2d(C, width, kernel=patch, stride=patch, bias=False), pre-packed
        # once to (C*p*p, width) bf16 so the forward never transposes weights.
        'patch_w': conv_w.reshape(width, -1).T.astype(jnp.bfloat16),
        'class_embedding': nrm((width,)),
        'pos_emb': nrm((seq, width)),
        'ln_pre_g': jnp.ones((1, width), jnp.float32),
        'ln_pre_b': jnp.zeros((1, width), jnp.float32),
        'ln_post_g': jnp.ones((1, width), jnp.float32),
        'ln_post_b': jnp.zeros((1, width), jnp.float32),
        'proj': nrm((width, embed_dim)).astype(jnp.bfloat16),
        'logit_scale': jnp.float32(math.log(1.0 / 0.07)),
        'small_packed': small_packed,
        # big weights stacked along L, pre-transposed to (in, out) bf16.
        'wqkv': nrm((layers, width, 3 * width)).astype(jnp.bfloat16),
        'wo': nrm((layers, width, width)).astype(jnp.bfloat16),
        'wfc': nrm((layers, width, mlp)).astype(jnp.bfloat16),
        'wpr': nrm((layers, mlp, width)).astype(jnp.bfloat16),
    }
    return params


def openclip_vit_forward(params, x):
    """x: (B, C, H, W) NCHW f32. Returns (image_features, None, logit_scale.exp())."""
    B, C, H, Wimg = x.shape
    p = params['patch_size']
    gh, gw = H // p, Wimg // p
    width = params['patch_w'].shape[1]

    # patchify (glue): NCHW -> (B*N, C*p*p), flattened (C, ph, pw) as Conv2d does.
    patches = x.reshape(B, C, gh, p, gw, p).transpose(0, 2, 4, 1, 3, 5)
    patches = patches.reshape(B * gh * gw, C * p * p).astype(jnp.bfloat16)
    tok = pallas_patch_embed(patches, params['patch_w']).reshape(B, gh * gw, width)

    # prepend class token (glue); +pos, ln_pre, blocks, ln_post, proj, L2-norm
    # all happen inside the single fused transformer pallas_call.
    cls = jnp.broadcast_to(params['class_embedding'].astype(jnp.bfloat16),
                           (B, 1, width))
    xseq = jnp.concatenate([cls, tok], axis=1)                      # (B, S, W) bf16

    feats = pallas_transformer(xseq, params)                        # (B, E) f32
    return feats, None, jnp.exp(params['logit_scale'])


if __name__ == "__main__":
    B, C, IMG, PATCH = 2, 3, 16, 8                # -> 4 patches + CLS, S = 5
    WIDTH, HEADS, LAYERS, EMBED = 256, 2, 2, 128  # dh = 128 (lane-aligned)

    params = init_params(jax.random.PRNGKey(0), channels=C, image_size=IMG,
                         patch_size=PATCH, width=WIDTH, heads=HEADS,
                         layers=LAYERS, embed_dim=EMBED)
    x = jax.random.normal(jax.random.PRNGKey(0), (B, C, IMG, IMG), dtype=jnp.float32)

    feats, _, logit_scale = openclip_vit_forward(params, x)
    jax.block_until_ready((feats, logit_scale))
    assert feats.shape == (B, EMBED)
    assert bool(jnp.all(jnp.isfinite(feats)))
    print("KERNEL_OK")
</pallas_src>

<mosaic_0001>
module attributes {stable_mosaic.version = 11 : i64} {
  func.func @_patch_embed_kernel(%arg0: i32, %arg1: memref<8x192xbf16, #tpu.memory_space<vmem>>, %arg2: memref<192x256xbf16, #tpu.memory_space<vmem>>, %arg3: memref<8x256xbf16, #tpu.memory_space<vmem>>) attributes {dimension_semantics = [#tpu.dimension_semantics<parallel>], iteration_bounds = array<i64: 1>, scalar_prefetch = 0 : i64, scratch_operands = 0 : i64, tpu.core_type = #tpu.core_type<tc>, window_params = [{transform_indices = @transform_0, window_bounds = array<i64: 8, 192>}, {pipeline_mode = #tpu.pipeline_mode<synchronous>, transform_indices = @transform_1, window_bounds = array<i64: 192, 256>}, {transform_indices = @transform_2, window_bounds = array<i64: 8, 256>}]} {
    %c0 = arith.constant 0 : index
    %c0_0 = arith.constant 0 : index
    %0 = vector.load %arg1[%c0, %c0_0] : memref<8x192xbf16, #tpu.memory_space<vmem>>, vector<8x192xbf16>
    %c0_1 = arith.constant 0 : index
    %c0_2 = arith.constant 0 : index
    %1 = vector.load %arg2[%c0_1, %c0_2] : memref<192x256xbf16, #tpu.memory_space<vmem>>, vector<192x256xbf16>
    %cst = arith.constant dense<0.000000e+00> : vector<8x256xf32>
    %2 = tpu.matmul %0, %1, %cst {dimension_numbers = #tpu.dot_dimension_numbers<[1], [0], [0], [1], [0, 0, 1, 1], [], []>} : vector<8x192xbf16>, vector<192x256xbf16>, vector<8x256xf32> -> vector<8x256xf32>
    %3 = arith.truncf %2 : vector<8x256xf32> to vector<8x256xbf16>
    %c0_3 = arith.constant 0 : index
    %c0_4 = arith.constant 0 : index
    %4 = vector.load %arg3[%c0_3, %c0_4] : memref<8x256xbf16, #tpu.memory_space<vmem>>, vector<8x256xbf16>
    tpu.vector_store %arg3[%c0_3, %c0_4], %3 {strides = array<i32>} : memref<8x256xbf16, #tpu.memory_space<vmem>>, vector<8x256xbf16>,
    return
  }
  func.func @transform_0(%arg0: i32) -> (i32, i32) {
    %c0_i32 = arith.constant 0 : i32
    %c0_i32_0 = arith.constant 0 : i32
    return %arg0, %c0_i32 : i32, i32
  }
  func.func @transform_1(%arg0: i32) -> (i32, i32) {
    %c0_i32 = arith.constant 0 : i32
    %c0_i32_0 = arith.constant 0 : i32
    %c0_i32_1 = arith.constant 0 : i32
    return %c0_i32, %c0_i32_0 : i32, i32
  }
  func.func @transform_2(%arg0: i32) -> (i32, i32) {
    %c0_i32 = arith.constant 0 : i32
    %c0_i32_0 = arith.constant 0 : i32
    return %arg0, %c0_i32 : i32, i32
  }
}

</mosaic_0001>

<llo_original>
// kernel: tpu_custom_call.1
$region0: #{tpu_custom_call.1}
  #allocation0 [shape = 'u32[]', space=smem, size = 0x4, offset = 0x4, fixed_abs, tag = 'smem constant byte address 0x4 - core index']
  #allocation1 [shape = 'u32[144,128]{1,0:T(1,128)}', space=vmem, size = 0x12000, scoped, tag = 'internal scratch']
  %s0 = inlined_call_operand.hbm [shape: bf16[8,192], index: 0, kind: input, shape index: {}]
  %s1 = inlined_call_operand.hbm [shape: bf16[192,256], index: 1, kind: input, shape index: {}]
  %s2 = inlined_call_operand.hbm [shape: bf16[8,256], index: 2, kind: output, shape index: {}]
  %s3 = sld [smem:[#allocation0]]
  $region26: #{tpu_custom_call.1} parent=0
    _
  %s5 = ssub.s32 1, %s3
  %s6 = scalar_select 0, %s5, %s3
  $region1: #{tpu_custom_call.1} parent=0
    #allocation2 [shape = 'u8[4096]{0}', space=vmem, size = 0x1000, scoped, tag = 'input window, operand 0, single buffered']
    #allocation3 [shape = 's32[1]{0}', space=sflag, size = 0x4, scoped, tag = 'scoped memory for tpu_custom_call.1']
    #allocation4 [shape = 's32[1]{0}', space=sflag, size = 0x4, scoped, tag = 'scoped memory for tpu_custom_call.1']
    #allocation5 [shape = 'u8[98304]{0}', space=vmem, size = 0x18000, scoped, tag = 'input window, operand 1, single buffered']
    #allocation6 [shape = 's32[1]{0}', space=sflag, size = 0x4, scoped, tag = 'scoped memory for tpu_custom_call.1']
    #allocation7 [shape = 'u8[4096]{0}', space=vmem, size = 0x1000, scoped, tag = 'output window, operand 0, single buffered']
    %7 = vsyncpa [#allocation3], 0
    %8 = vsyncpa [#allocation6], 0
    %9 = vsyncpa [#allocation4], 0
    // Predicated region
    $region2: #{tpu_custom_call.1} parent=1 // pred_check
      _
    $region3: #{tpu_custom_call.1} parent=1 // pred_check_branch
      %11 = sbr.rel (0) target = $region5
    $region4: #{tpu_custom_call.1} parent=1 // pred_region
      %s13 = ssub.s32 128, 128
      %14 = vsyncadd [#allocation3], %s13
      %s16 = sshll.u32 [#allocation2], 4
      %s17 = int_to_ptr.vmem [resolvable:$true] %s16
      %19 = dma.hbm_to_vmem [thread:$0]  %s0, 128, %s17, [#allocation3]
    $region5: #{tpu_custom_call.1} parent=1 // pred_fallthru
      _
    // Predicated region
    $region6: #{tpu_custom_call.1} parent=1 // pred_check
      _
    $region7: #{tpu_custom_call.1} parent=1 // pred_check_branch
      %21 = sbr.rel (0) target = $region9
    $region8: #{tpu_custom_call.1} parent=1 // pred_region
      %s23 = ssub.s32 3072, 3072
      %24 = vsyncadd [#allocation6], %s23
      %s25 = sshll.u32 [#allocation5], 4
      %s26 = int_to_ptr.vmem [resolvable:$true] %s25
      %31 = dma.hbm_to_vmem [thread:$0]  %s1, 3072, %s26, [#allocation6], 128, 128, 8
    $region9: #{tpu_custom_call.1} parent=1 // pred_fallthru
      _
    // Predicated region
    $region10: #{tpu_custom_call.1} parent=1 // pred_check
      _
    $region11: #{tpu_custom_call.1} parent=1 // pred_check_branch
      %33 = sbr.rel (0) target = $region13
    $region12: #{tpu_custom_call.1} parent=1 // pred_region
      %34 = dma.done [#allocation3], 128
    $region13: #{tpu_custom_call.1} parent=1 // pred_fallthru
      _
    // Predicated region
    $region14: #{tpu_custom_call.1} parent=1 // pred_check
      _
    $region15: #{tpu_custom_call.1} parent=1 // pred_check_branch
      %36 = sbr.rel (0) target = $region17
    $region16: #{tpu_custom_call.1} parent=1 // pred_region
      %37 = dma.done [#allocation6], 3072
    $region17: #{tpu_custom_call.1} parent=1 // pred_fallthru
      _
    %v39 = vld [vmem:[#allocation2] sm:$0xff]
    %v40 = vld [vmem:[#allocation5] sm:$0xff]
    %v41 = vld [vmem:[#allocation5 + $0x8] sm:$0xff]
    %v42 = vld [vmem:[#allocation5 + $0x10] sm:$0xff]
    %v43 = vld [vmem:[#allocation5 + $0x18] sm:$0xff]
    %v44 = vld [vmem:[#allocation5 + $0x20] sm:$0xff]
    %v45 = vld [vmem:[#allocation5 + $0x28] sm:$0xff]
    %v46 = vld [vmem:[#allocation5 + $0x30] sm:$0xff]
    %v47 = vld [vmem:[#allocation5 + $0x38] sm:$0xff]
    %v48 = vld [vmem:[#allocation5 + $0x40] sm:$0xff]
    %v49 = vld [vmem:[#allocation5 + $0x48] sm:$0xff]
    %v50 = vld [vmem:[#allocation5 + $0x50] sm:$0xff]
    %v51 = vld [vmem:[#allocation5 + $0x58] sm:$0xff]
    %v52 = vld [vmem:[#allocation5 + $0x60] sm:$0xff]
    %v53 = vld [vmem:[#allocation5 + $0x68] sm:$0xff]
    %v54 = vld [vmem:[#allocation5 + $0x70] sm:$0xff]
    %v55 = vld [vmem:[#allocation5 + $0x78] sm:$0xff]
    %v56 = vld [vmem:[#allocation5 + $0x80] sm:$0xff]
    %v57 = vld [vmem:[#allocation5 + $0x88] sm:$0xff]
    %v58 = vld [vmem:[#allocation5 + $0x90] sm:$0xff]
    %v59 = vld [vmem:[#allocation5 + $0x98] sm:$0xff]
    %v60 = vld [vmem:[#allocation5 + $0xa0] sm:$0xff]
    %v61 = vld [vmem:[#allocation5 + $0xa8] sm:$0xff]
    %v62 = vld [vmem:[#allocation5 + $0xb0] sm:$0xff]
    %v63 = vld [vmem:[#allocation5 + $0xb8] sm:$0xff]
    %v65 = vunpack.c.l.b16 %v39
    %v66 = vunpack.c.h.b16 %v39
    %v67 = vpack.c.b16 %v65, %v65
    %v68 = vpack.c.b16 %v66, %v66
    %v94 = vunpack.c.l.b16 %v40
    %v95 = vunpack.c.h.b16 %v40
    %v96 = vunpack.c.l.b16 %v41
    %v97 = vunpack.c.h.b16 %v41
    %v98 = vunpack.c.l.b16 %v42
    %v99 = vunpack.c.h.b16 %v42
    %v100 = vunpack.c.l.b16 %v43
    %v101 = vunpack.c.h.b16 %v43
    %v102 = vunpack.c.l.b16 %v44
    %v103 = vunpack.c.h.b16 %v44
    %v104 = vunpack.c.l.b16 %v45
    %v105 = vunpack.c.h.b16 %v45
    %v106 = vunpack.c.l.b16 %v46
    %v107 = vunpack.c.h.b16 %v46
    %v108 = vunpack.c.l.b16 %v47
    %v109 = vunpack.c.h.b16 %v47
    %v110 = vunpack.c.l.b16 %v48
    %v111 = vunpack.c.h.b16 %v48
    %v112 = vunpack.c.l.b16 %v49
    %v113 = vunpack.c.h.b16 %v49
    %v114 = vunpack.c.l.b16 %v50
    %v115 = vunpack.c.h.b16 %v50
    %v116 = vunpack.c.l.b16 %v51
    %v117 = vunpack.c.h.b16 %v51
    %v118 = vunpack.c.l.b16 %v52
    %v119 = vunpack.c.h.b16 %v52
    %v120 = vunpack.c.l.b16 %v53
    %v121 = vunpack.c.h.b16 %v53
    %v122 = vunpack.c.l.b16 %v54
    %v123 = vunpack.c.h.b16 %v54
    %v124 = vunpack.c.l.b16 %v55
    %v125 = vunpack.c.h.b16 %v55
    %v126 = vunpack.c.l.b16 %v56
    %v127 = vunpack.c.h.b16 %v56
    %v128 = vunpack.c.l.b16 %v57
    %v129 = vunpack.c.h.b16 %v57
    %v130 = vunpack.c.l.b16 %v58
    %v131 = vunpack.c.h.b16 %v58
    %v132 = vunpack.c.l.b16 %v59
    %v133 = vunpack.c.h.b16 %v59
    %v134 = vunpack.c.l.b16 %v60
    %v135 = vunpack.c.h.b16 %v60
    %v136 = vunpack.c.l.b16 %v61
    %v137 = vunpack.c.h.b16 %v61
    %v138 = vunpack.c.l.b16 %v62
    %v139 = vunpack.c.h.b16 %v62
    %v140 = vunpack.c.l.b16 %v63
    %v141 = vunpack.c.h.b16 %v63
    %v142 = vpack.c.b16 %v96, %v94
    %v143 = vpack.c.b16 %v97, %v95
    %v144 = vpack.c.b16 %v100, %v98
    %v145 = vpack.c.b16 %v101, %v99
    %v146 = vpack.c.b16 %v104, %v102
    %v147 = vpack.c.b16 %v105, %v103
    %v148 = vpack.c.b16 %v108, %v106
    %v149 = vpack.c.b16 %v109, %v107
    %v150 = vpack.c.b16 %v112, %v110
    %v151 = vpack.c.b16 %v113, %v111
    %v152 = vpack.c.b16 %v116, %v114
    %v153 = vpack.c.b16 %v117, %v115
    %v154 = vpack.c.b16 %v120, %v118
    %v155 = vpack.c.b16 %v121, %v119
    %v156 = vpack.c.b16 %v124, %v122
    %v157 = vpack.c.b16 %v125, %v123
    %v158 = vpack.c.b16 %v128, %v126
    %v159 = vpack.c.b16 %v129, %v127
    %v160 = vpack.c.b16 %v132, %v130
    %v161 = vpack.c.b16 %v133, %v131
    %v162 = vpack.c.b16 %v136, %v134
    %v163 = vpack.c.b16 %v137, %v135
    %v164 = vpack.c.b16 %v140, %v138
    %v165 = vpack.c.b16 %v141, %v139
    %vm190 = vcmask 523264
    %v192 = vsel %vm190, %v68, 0
    %194 = vmatprep.subr.bf16.mxu0 %v157
    %195 = vmatpush1.bf16.msra.mxu0 %v156
    %196 = vmatprep.subr.bf16.mxu0 %v155
    %197 = vmatpush1.bf16.msra.mxu0 %v154
    %198 = vmatprep.subr.bf16.mxu0 %v153
    %199 = vmatpush1.bf16.msra.mxu0 %v152
    %200 = vmatprep.subr.bf16.mxu0 %v151
    %201 = vmatpush1.bf16.msra.mxu0 %v150
    %202 = vmatprep.subr.bf16.mxu0 %v149
    %203 = vmatpush1.bf16.msra.mxu0 %v148
    %204 = vmatprep.subr.bf16.mxu0 %v147
    %205 = vmatpush1.bf16.msra.mxu0 %v146
    %206 = vmatprep.subr.bf16.mxu0 %v145
    %207 = vmatpush1.bf16.msra.mxu0 %v144
    %208 = vmatprep.subr.bf16.mxu0 %v143
    %209 = vmatpush1.bf16.msra.mxu0 %v142
    %210 = vmatprep.subr.bf16.mxu0 0
    %211 = vmatpush2.bf16.msra.mxu0 0
    %212 = vmatprep.subr.bf16.mxu0 0
    %213 = vmatpush2.bf16.msra.mxu0 0
    %214 = vmatprep.subr.bf16.mxu0 0
    %215 = vmatpush2.bf16.msra.mxu0 0
    %216 = vmatprep.subr.bf16.mxu0 0
    %217 = vmatpush2.bf16.msra.mxu0 0
    %218 = vmatprep.subr.bf16.mxu0 %v165
    %219 = vmatpush2.bf16.msra.mxu0 %v164
    %220 = vmatprep.subr.bf16.mxu0 %v163
    %221 = vmatpush2.bf16.msra.mxu0 %v162
    %222 = vmatprep.subr.bf16.mxu0 %v161
    %223 = vmatpush2.bf16.msra.mxu0 %v160
    %224 = vmatprep.subr.bf16.mxu0 %v159
    %225 = vmatpush2.bf16.msra.mxu0 %v158
    %226 = vmatprep.mubr.bf16.mxu0 %v192
    %227 = vmatmul.mubr.bf16.gmra.mxu0 %v67
    %v228 = vpop.f32.mrf.mxu0
    %v229 = vadd.f32 0.0, %v228
    %v230 = vpop.f32.mrf.mxu0
    %v231 = vadd.f32 0.0, %v230
    %v232 = vpop.f32.mrf.mxu0
    %v233 = vpop.f32.mrf.mxu0
    %234 = vdwg.mxu0
    %v235 = vpack.c.bf16 %v229, %v229
    %v236 = vpack.c.bf16 %v231, %v231
    %v239 = vunpack.c.l.b16 %v235
    %v240 = vunpack.c.l.b16 %v236
    %v241 = vpack.c.b16 %v240, %v239
    %243 = vst [vmem:[#allocation7] sm:$0xff] %v241
    // Predicated region
    $region18: #{tpu_custom_call.1} parent=1 // pred_check
      _
    $region19: #{tpu_custom_call.1} parent=1 // pred_check_branch
      %245 = sbr.rel (0) target = $region21
    $region20: #{tpu_custom_call.1} parent=1 // pred_region
      %s247 = ssub.s32 128, 128
      %248 = vsyncadd [#allocation4], %s247
      %s250 = sshll.u32 [#allocation7], 4
      %s251 = int_to_ptr.vmem [resolvable:$true] %s250
      %253 = dma.vmem_to_hbm [thread:$0]  %s251, 128, %s2, [#allocation4]
    $region21: #{tpu_custom_call.1} parent=1 // pred_fallthru
      _
    // Predicated region
    $region22: #{tpu_custom_call.1} parent=1 // pred_check
      _
    $region23: #{tpu_custom_call.1} parent=1 // pred_check_branch
      %255 = sbr.rel (0) target = $region25
    $region24: #{tpu_custom_call.1} parent=1 // pred_region
      %256 = dma.done [#allocation4], 128
    $region25: #{tpu_custom_call.1} parent=1 // pred_fallthru
      _
    %257 = vsyncpa [#allocation3], 1
    %258 = vsyncpa [#allocation6], 1
    %259 = vsyncpa [#allocation4], 1

</llo_original>
